<compile_context>
chip_gen: v7x
topology: tpu7x:2x2x1
jax: 0.10.0
libtpu: 0.0.40
codegen_flags: <defaults>
</compile_context>

<pallas_src>
import jax
import jax.numpy as jnp
from jax.experimental import pallas as pl
from jax.experimental.pallas import tpu as pltpu


def bilstm_kernel(xc_ref,       # (S, 2E)  [x[t] | x[S-1-t]] per row
                  wx_ref,       # (2E, 8H) combined input->gate weights (both dirs)
                  wrec_ref,     # (2H, 8H) block-diagonal recurrent weights (both dirs)
                  b_ref,        # (1, 8H)  combined bias (b_ih + b_hh, both dirs)
                  wtf_ref,      # (2H, L)  tag weights for the forward-time-order rows
                  wtb_ref,      # (2H, L)  tag weights for the backward-time-order rows
                  btag_ref,     # (1, L)
                  out_ref):     # (S, L)   log-softmax scores
    S = xc_ref.shape[0]
    H2 = wrec_ref.shape[0]            # 2 * per-direction hidden size

    # Input->gate contributions for all timesteps, both directions: one MXU matmul.
    gx_all = (jnp.dot(xc_ref[...], wx_ref[...], preferred_element_type=jnp.float32)
              + b_ref[...])                                   # (S, 8H)

    wrec = wrec_ref[...]                                       # (2H, 8H)

    # Fused forward/backward recurrence. Column layout of the 8H gate axis:
    #   [ i_f | i_b | f_f | f_b | o_f | o_b | g_f | g_b ]  (each block width H)
    # so i/f/o gates live in the first 6H lanes (one sigmoid) and the cell
    # candidate g in the last 2H lanes (one tanh).
    h = jnp.zeros((1, H2), jnp.float32)                        # [h_fwd | h_bwd]
    c = jnp.zeros((1, H2), jnp.float32)                        # [c_fwd | c_bwd]

    rows = []                                                  # register-resident
    for k in range(S):                                         # fully unrolled (S static)
        g = gx_all[k:k + 1, :] + jnp.dot(h, wrec,
                                         preferred_element_type=jnp.float32)  # (1, 8H)
        sig = jax.nn.sigmoid(g[:, :3 * H2])                    # i, f, o (both dirs)
        gg = jnp.tanh(g[:, 3 * H2:])                           # cell candidate (both dirs)
        i_g = sig[:, 0:H2]
        f_g = sig[:, H2:2 * H2]
        o_g = sig[:, 2 * H2:3 * H2]
        c = f_g * c + i_g * gg
        h = o_g * jnp.tanh(c)
        rows.append(h)

    # rows[k] = [ h_fwd(t=k) | h_bwd(t=S-1-k) ].
    # Forward halves are already in time order; backward halves need the rows
    # reversed — done as a static Python list reversal (no runtime flip).
    h_fwd_order = jnp.concatenate(rows, axis=0)                # (S, 2H)
    h_bwd_order = jnp.concatenate(rows[::-1], axis=0)          # (S, 2H)

    # hidden2tag: wtf/wtb are zero-padded on the host so each matmul picks out
    # only the relevant half — no in-kernel lane slicing or concat needed.
    label_space = (jnp.dot(h_fwd_order, wtf_ref[...], preferred_element_type=jnp.float32)
                   + jnp.dot(h_bwd_order, wtb_ref[...], preferred_element_type=jnp.float32)
                   + btag_ref[...])                            # (S, L)

    # log_softmax along dim=1 (numerically stabilized)
    m = jnp.max(label_space, axis=1, keepdims=True)
    z = label_space - m
    lse = jnp.log(jnp.sum(jnp.exp(z), axis=1, keepdims=True))
    out_ref[...] = z - lse


def bilstm_forward(embeds, packed):
    """embeds: (S, E) float32; packed: dict from pack_params()."""
    S = embeds.shape[0]
    L = packed["btag"].shape[1]

    # Host glue: pair each timestep with the time-reversed input so the kernel
    # can compute both directions' gate inputs with a single matmul.
    xc = jnp.concatenate([embeds, embeds[::-1]], axis=1).astype(jnp.float32)  # (S, 2E)

    vmem = pl.BlockSpec(memory_space=pltpu.MemorySpace.VMEM)
    return pl.pallas_call(
        bilstm_kernel,
        out_shape=jax.ShapeDtypeStruct((S, L), jnp.float32),
        in_specs=[vmem] * 7,
        out_specs=vmem,
    )(xc, packed["wx"], packed["wrec"], packed["bcomb"],
      packed["wtag_f_pad"], packed["wtag_b_pad"], packed["btag"])


def init_params(key, vocab_size, embedding_dim, hidden_dim, num_labels):
    """Deterministic parameter init matching the PyTorch module's shapes."""
    H = hidden_dim // 2
    E = embedding_dim
    keys = jax.random.split(key, 11)

    def u(k, shape, bound):
        return jax.random.uniform(k, shape, jnp.float32, -bound, bound)

    # nn.Embedding: N(0, 1)
    emb = jax.random.normal(keys[0], (vocab_size, E), jnp.float32)

    # nn.LSTM(embedding_dim, hidden_dim//2, bidirectional=True): U(-1/sqrt(H), 1/sqrt(H))
    k_lstm = 1.0 / float(H) ** 0.5
    wih_f = u(keys[1], (4 * H, E), k_lstm)
    whh_f = u(keys[2], (4 * H, H), k_lstm)
    bih_f = u(keys[3], (4 * H,), k_lstm)
    bhh_f = u(keys[4], (4 * H,), k_lstm)
    wih_b = u(keys[5], (4 * H, E), k_lstm)
    whh_b = u(keys[6], (4 * H, H), k_lstm)
    bih_b = u(keys[7], (4 * H,), k_lstm)
    bhh_b = u(keys[8], (4 * H,), k_lstm)

    # nn.Linear(hidden_dim, num_labels): U(-1/sqrt(hidden_dim), 1/sqrt(hidden_dim))
    k_lin = 1.0 / float(hidden_dim) ** 0.5
    wtag = u(keys[9], (num_labels, hidden_dim), k_lin)
    btag = u(keys[10], (num_labels,), k_lin)

    return dict(
        emb=emb,
        wih_f=wih_f, whh_f=whh_f, b_f=(bih_f + bhh_f).reshape(1, 4 * H),
        wih_b=wih_b, whh_b=whh_b, b_b=(bih_b + bhh_b).reshape(1, 4 * H),
        wtag=wtag, btag=btag.reshape(1, num_labels),
    )


def pack_params(params):
    """Host-side re-layout of the PyTorch-shaped weights for the fused kernel.

    Combined 8H gate axis layout: [i_f,i_b, f_f,f_b, o_f,o_b, g_f,g_b]
    (PyTorch row order is i,f,g,o).
    """
    H = params["whh_f"].shape[1]
    E = params["wih_f"].shape[1]
    L = params["wtag"].shape[0]

    def blocks(w):  # split PyTorch (4H, X) rows into per-gate (H, X) blocks
        return {"i": w[0:H], "f": w[H:2 * H], "g": w[2 * H:3 * H], "o": w[3 * H:4 * H]}

    order = ("i", "f", "o", "g")  # sigmoid gates first, tanh candidate last

    wx = jnp.zeros((2 * E, 8 * H), jnp.float32)
    wrec = jnp.zeros((2 * H, 8 * H), jnp.float32)
    bcomb = jnp.zeros((8 * H,), jnp.float32)

    wih = {0: blocks(params["wih_f"]), 1: blocks(params["wih_b"])}
    whh = {0: blocks(params["whh_f"]), 1: blocks(params["whh_b"])}
    bias = {0: blocks(params["b_f"].reshape(4 * H, 1)),
            1: blocks(params["b_b"].reshape(4 * H, 1))}

    for gi, gate in enumerate(order):
        for d in (0, 1):  # 0 = forward direction, 1 = backward direction
            c0 = (2 * gi + d) * H
            cols = slice(c0, c0 + H)
            rows_x = slice(d * E, (d + 1) * E)   # fwd reads x[t], bwd reads x[S-1-t]
            rows_h = slice(d * H, (d + 1) * H)   # block-diagonal recurrent weight
            wx = wx.at[rows_x, cols].set(wih[d][gate].T)
            wrec = wrec.at[rows_h, cols].set(whh[d][gate].T)
            bcomb = bcomb.at[cols].set(bias[d][gate][:, 0])

    wtag = params["wtag"]                                  # (L, 2H)
    zeros_hl = jnp.zeros((H, L), jnp.float32)
    return dict(
        wx=wx,
        wrec=wrec,
        bcomb=bcomb.reshape(1, 8 * H),
        # Padded so h_fwd_order / h_bwd_order matmuls pick out only their half.
        wtag_f_pad=jnp.concatenate([wtag[:, :H].T, zeros_hl], axis=0),   # (2H, L)
        wtag_b_pad=jnp.concatenate([zeros_hl, wtag[:, H:].T], axis=0),   # (2H, L)
        btag=params["btag"].reshape(1, L),
    )


def bilstm_reference(embeds, params):
    """Pure-JAX reference with PyTorch semantics (gate order i,f,g,o)."""
    H = params["whh_f"].shape[1]
    S = embeds.shape[0]

    def cell(h, c, x, wih, whh, b):
        g = x @ wih.T + h @ whh.T + b
        i = jax.nn.sigmoid(g[0:H])
        f = jax.nn.sigmoid(g[H:2 * H])
        gg = jnp.tanh(g[2 * H:3 * H])
        o = jax.nn.sigmoid(g[3 * H:4 * H])
        c = f * c + i * gg
        h = o * jnp.tanh(c)
        return h, c

    b_f = params["b_f"].reshape(-1)
    b_b = params["b_b"].reshape(-1)

    h = jnp.zeros((H,), jnp.float32)
    c = jnp.zeros((H,), jnp.float32)
    hf = []
    for t in range(S):
        h, c = cell(h, c, embeds[t], params["wih_f"], params["whh_f"], b_f)
        hf.append(h)

    h = jnp.zeros((H,), jnp.float32)
    c = jnp.zeros((H,), jnp.float32)
    hb = [None] * S
    for t in range(S - 1, -1, -1):
        h, c = cell(h, c, embeds[t], params["wih_b"], params["whh_b"], b_b)
        hb[t] = h

    lstm_out = jnp.stack([jnp.concatenate([hf[t], hb[t]]) for t in range(S)])  # (S, 2H)
    label = lstm_out @ params["wtag"].T + params["btag"].reshape(-1)
    return jax.nn.log_softmax(label, axis=1)


if __name__ == "__main__":
    vocab_size = 50
    embedding_dim = 32
    hidden_dim = 32       # per-direction hidden = 16
    num_labels = 4
    seq_len = 8

    key = jax.random.PRNGKey(0)
    pkey, skey = jax.random.split(key)
    params = init_params(pkey, vocab_size, embedding_dim, hidden_dim, num_labels)
    packed = pack_params(params)

    # "sentence" of word indices; embedding lookup is plain-JAX glue (gather).
    sentence = jax.random.randint(skey, (seq_len,), 0, vocab_size, dtype=jnp.int32)
    embeds = params["emb"][sentence]                       # (S, E)

    label_scores = bilstm_forward(embeds, packed)          # (S, num_labels)
    label_scores = jax.block_until_ready(label_scores)

    ref = bilstm_reference(embeds, params)

    assert label_scores.shape == (seq_len, num_labels)
    assert bool(jnp.all(jnp.isfinite(label_scores)))
    assert bool(jnp.allclose(label_scores, ref, atol=1e-3, rtol=1e-3))
    print("KERNEL_OK")
</pallas_src>

<mosaic_0001>
module attributes {stable_mosaic.version = 11 : i64} {
  func.func @bilstm_kernel(%arg0: memref<8x64xf32, #tpu.memory_space<vmem>>, %arg1: memref<64x128xf32, #tpu.memory_space<vmem>>, %arg2: memref<32x128xf32, #tpu.memory_space<vmem>>, %arg3: memref<1x128xf32, #tpu.memory_space<vmem>>, %arg4: memref<32x4xf32, #tpu.memory_space<vmem>>, %arg5: memref<32x4xf32, #tpu.memory_space<vmem>>, %arg6: memref<1x4xf32, #tpu.memory_space<vmem>>, %arg7: memref<8x4xf32, #tpu.memory_space<vmem>>) attributes {dimension_semantics = [], scalar_prefetch = 0 : i64, scratch_operands = 0 : i64, tpu.core_type = #tpu.core_type<tc>} {
    %c0 = arith.constant 0 : index
    %c0_0 = arith.constant 0 : index
    %0 = vector.load %arg0[%c0, %c0_0] : memref<8x64xf32, #tpu.memory_space<vmem>>, vector<8x64xf32>
    %c0_1 = arith.constant 0 : index
    %c0_2 = arith.constant 0 : index
    %1 = vector.load %arg1[%c0_1, %c0_2] : memref<64x128xf32, #tpu.memory_space<vmem>>, vector<64x128xf32>
    %cst = arith.constant dense<0.000000e+00> : vector<8x128xf32>
    %2 = tpu.matmul %0, %1, %cst {dimension_numbers = #tpu.dot_dimension_numbers<[1], [0], [0], [1], [0, 0, 1, 1], [], []>} : vector<8x64xf32>, vector<64x128xf32>, vector<8x128xf32> -> vector<8x128xf32>
    %c0_3 = arith.constant 0 : index
    %c0_4 = arith.constant 0 : index
    %3 = vector.load %arg3[%c0_3, %c0_4] : memref<1x128xf32, #tpu.memory_space<vmem>>, vector<1x128xf32>
    %4 = vector.broadcast %3 : vector<1x128xf32> to vector<8x128xf32>
    %5 = arith.addf %2, %4 : vector<8x128xf32>
    %c0_5 = arith.constant 0 : index
    %c0_6 = arith.constant 0 : index
    %6 = vector.load %arg2[%c0_5, %c0_6] : memref<32x128xf32, #tpu.memory_space<vmem>>, vector<32x128xf32>
    %cst_7 = arith.constant 0.000000e+00 : f32
    %7 = vector.broadcast %cst_7 : f32 to vector<1x32xf32>
    %cst_8 = arith.constant 0.000000e+00 : f32
    %8 = vector.broadcast %cst_8 : f32 to vector<1x32xf32>
    %9 = vector.extract_strided_slice %5 {offsets = [0, 0], sizes = [1, 128], strides = [1, 1]} : vector<8x128xf32> to vector<1x128xf32>
    %cst_9 = arith.constant dense<0.000000e+00> : vector<1x128xf32>
    %10 = tpu.matmul %7, %6, %cst_9 {dimension_numbers = #tpu.dot_dimension_numbers<[1], [0], [0], [1], [0, 0, 1, 1], [], []>} : vector<1x32xf32>, vector<32x128xf32>, vector<1x128xf32> -> vector<1x128xf32>
    %11 = arith.addf %9, %10 : vector<1x128xf32>
    %12 = vector.extract_strided_slice %11 {offsets = [0, 0], sizes = [1, 96], strides = [1, 1]} : vector<1x128xf32> to vector<1x96xf32>
    %13 = arith.negf %12 : vector<1x96xf32>
    %14 = math.exp %13 : vector<1x96xf32>
    %cst_10 = arith.constant 1.000000e+00 : f32
    %15 = vector.broadcast %cst_10 : f32 to vector<1x96xf32>
    %16 = arith.addf %15, %14 : vector<1x96xf32>
    %17 = arith.divf %15, %16 : vector<1x96xf32>
    %18 = vector.extract_strided_slice %11 {offsets = [0, 96], sizes = [1, 32], strides = [1, 1]} : vector<1x128xf32> to vector<1x32xf32>
    %19 = math.tanh %18 : vector<1x32xf32>
    %20 = vector.extract_strided_slice %17 {offsets = [0, 0], sizes = [1, 32], strides = [1, 1]} : vector<1x96xf32> to vector<1x32xf32>
    %21 = vector.extract_strided_slice %17 {offsets = [0, 32], sizes = [1, 32], strides = [1, 1]} : vector<1x96xf32> to vector<1x32xf32>
    %22 = vector.extract_strided_slice %17 {offsets = [0, 64], sizes = [1, 32], strides = [1, 1]} : vector<1x96xf32> to vector<1x32xf32>
    %23 = arith.mulf %21, %8 : vector<1x32xf32>
    %24 = arith.mulf %20, %19 : vector<1x32xf32>
    %25 = arith.addf %23, %24 : vector<1x32xf32>
    %26 = math.tanh %25 : vector<1x32xf32>
    %27 = arith.mulf %22, %26 : vector<1x32xf32>
    %28 = vector.extract_strided_slice %5 {offsets = [1, 0], sizes = [1, 128], strides = [1, 1]} : vector<8x128xf32> to vector<1x128xf32>
    %cst_11 = arith.constant dense<0.000000e+00> : vector<1x128xf32>
    %29 = tpu.matmul %27, %6, %cst_11 {dimension_numbers = #tpu.dot_dimension_numbers<[1], [0], [0], [1], [0, 0, 1, 1], [], []>} : vector<1x32xf32>, vector<32x128xf32>, vector<1x128xf32> -> vector<1x128xf32>
    %30 = arith.addf %28, %29 : vector<1x128xf32>
    %31 = vector.extract_strided_slice %30 {offsets = [0, 0], sizes = [1, 96], strides = [1, 1]} : vector<1x128xf32> to vector<1x96xf32>
    %32 = arith.negf %31 : vector<1x96xf32>
    %33 = math.exp %32 : vector<1x96xf32>
    %cst_12 = arith.constant 1.000000e+00 : f32
    %34 = vector.broadcast %cst_12 : f32 to vector<1x96xf32>
    %35 = arith.addf %34, %33 : vector<1x96xf32>
    %36 = arith.divf %34, %35 : vector<1x96xf32>
    %37 = vector.extract_strided_slice %30 {offsets = [0, 96], sizes = [1, 32], strides = [1, 1]} : vector<1x128xf32> to vector<1x32xf32>
    %38 = math.tanh %37 : vector<1x32xf32>
    %39 = vector.extract_strided_slice %36 {offsets = [0, 0], sizes = [1, 32], strides = [1, 1]} : vector<1x96xf32> to vector<1x32xf32>
    %40 = vector.extract_strided_slice %36 {offsets = [0, 32], sizes = [1, 32], strides = [1, 1]} : vector<1x96xf32> to vector<1x32xf32>
    %41 = vector.extract_strided_slice %36 {offsets = [0, 64], sizes = [1, 32], strides = [1, 1]} : vector<1x96xf32> to vector<1x32xf32>
    %42 = arith.mulf %40, %25 : vector<1x32xf32>
    %43 = arith.mulf %39, %38 : vector<1x32xf32>
    %44 = arith.addf %42, %43 : vector<1x32xf32>
    %45 = math.tanh %44 : vector<1x32xf32>
    %46 = arith.mulf %41, %45 : vector<1x32xf32>
    %47 = vector.extract_strided_slice %5 {offsets = [2, 0], sizes = [1, 128], strides = [1, 1]} : vector<8x128xf32> to vector<1x128xf32>
    %cst_13 = arith.constant dense<0.000000e+00> : vector<1x128xf32>
    %48 = tpu.matmul %46, %6, %cst_13 {dimension_numbers = #tpu.dot_dimension_numbers<[1], [0], [0], [1], [0, 0, 1, 1], [], []>} : vector<1x32xf32>, vector<32x128xf32>, vector<1x128xf32> -> vector<1x128xf32>
    %49 = arith.addf %47, %48 : vector<1x128xf32>
    %50 = vector.extract_strided_slice %49 {offsets = [0, 0], sizes = [1, 96], strides = [1, 1]} : vector<1x128xf32> to vector<1x96xf32>
    %51 = arith.negf %50 : vector<1x96xf32>
    %52 = math.exp %51 : vector<1x96xf32>
    %cst_14 = arith.constant 1.000000e+00 : f32
    %53 = vector.broadcast %cst_14 : f32 to vector<1x96xf32>
    %54 = arith.addf %53, %52 : vector<1x96xf32>
    %55 = arith.divf %53, %54 : vector<1x96xf32>
    %56 = vector.extract_strided_slice %49 {offsets = [0, 96], sizes = [1, 32], strides = [1, 1]} : vector<1x128xf32> to vector<1x32xf32>
    %57 = math.tanh %56 : vector<1x32xf32>
    %58 = vector.extract_strided_slice %55 {offsets = [0, 0], sizes = [1, 32], strides = [1, 1]} : vector<1x96xf32> to vector<1x32xf32>
    %59 = vector.extract_strided_slice %55 {offsets = [0, 32], sizes = [1, 32], strides = [1, 1]} : vector<1x96xf32> to vector<1x32xf32>
    %60 = vector.extract_strided_slice %55 {offsets = [0, 64], sizes = [1, 32], strides = [1, 1]} : vector<1x96xf32> to vector<1x32xf32>
    %61 = arith.mulf %59, %44 : vector<1x32xf32>
    %62 = arith.mulf %58, %57 : vector<1x32xf32>
    %63 = arith.addf %61, %62 : vector<1x32xf32>
    %64 = math.tanh %63 : vector<1x32xf32>
    %65 = arith.mulf %60, %64 : vector<1x32xf32>
    %66 = vector.extract_strided_slice %5 {offsets = [3, 0], sizes = [1, 128], strides = [1, 1]} : vector<8x128xf32> to vector<1x128xf32>
    %cst_15 = arith.constant dense<0.000000e+00> : vector<1x128xf32>
    %67 = tpu.matmul %65, %6, %cst_15 {dimension_numbers = #tpu.dot_dimension_numbers<[1], [0], [0], [1], [0, 0, 1, 1], [], []>} : vector<1x32xf32>, vector<32x128xf32>, vector<1x128xf32> -> vector<1x128xf32>
    %68 = arith.addf %66, %67 : vector<1x128xf32>
    %69 = vector.extract_strided_slice %68 {offsets = [0, 0], sizes = [1, 96], strides = [1, 1]} : vector<1x128xf32> to vector<1x96xf32>
    %70 = arith.negf %69 : vector<1x96xf32>
    %71 = math.exp %70 : vector<1x96xf32>
    %cst_16 = arith.constant 1.000000e+00 : f32
    %72 = vector.broadcast %cst_16 : f32 to vector<1x96xf32>
    %73 = arith.addf %72, %71 : vector<1x96xf32>
    %74 = arith.divf %72, %73 : vector<1x96xf32>
    %75 = vector.extract_strided_slice %68 {offsets = [0, 96], sizes = [1, 32], strides = [1, 1]} : vector<1x128xf32> to vector<1x32xf32>
    %76 = math.tanh %75 : vector<1x32xf32>
    %77 = vector.extract_strided_slice %74 {offsets = [0, 0], sizes = [1, 32], strides = [1, 1]} : vector<1x96xf32> to vector<1x32xf32>
    %78 = vector.extract_strided_slice %74 {offsets = [0, 32], sizes = [1, 32], strides = [1, 1]} : vector<1x96xf32> to vector<1x32xf32>
    %79 = vector.extract_strided_slice %74 {offsets = [0, 64], sizes = [1, 32], strides = [1, 1]} : vector<1x96xf32> to vector<1x32xf32>
    %80 = arith.mulf %78, %63 : vector<1x32xf32>
    %81 = arith.mulf %77, %76 : vector<1x32xf32>
    %82 = arith.addf %80, %81 : vector<1x32xf32>
    %83 = math.tanh %82 : vector<1x32xf32>
    %84 = arith.mulf %79, %83 : vector<1x32xf32>
    %85 = vector.extract_strided_slice %5 {offsets = [4, 0], sizes = [1, 128], strides = [1, 1]} : vector<8x128xf32> to vector<1x128xf32>
    %cst_17 = arith.constant dense<0.000000e+00> : vector<1x128xf32>
    %86 = tpu.matmul %84, %6, %cst_17 {dimension_numbers = #tpu.dot_dimension_numbers<[1], [0], [0], [1], [0, 0, 1, 1], [], []>} : vector<1x32xf32>, vector<32x128xf32>, vector<1x128xf32> -> vector<1x128xf32>
    %87 = arith.addf %85, %86 : vector<1x128xf32>
    %88 = vector.extract_strided_slice %87 {offsets = [0, 0], sizes = [1, 96], strides = [1, 1]} : vector<1x128xf32> to vector<1x96xf32>
    %89 = arith.negf %88 : vector<1x96xf32>
    %90 = math.exp %89 : vector<1x96xf32>
    %cst_18 = arith.constant 1.000000e+00 : f32
    %91 = vector.broadcast %cst_18 : f32 to vector<1x96xf32>
    %92 = arith.addf %91, %90 : vector<1x96xf32>
    %93 = arith.divf %91, %92 : vector<1x96xf32>
    %94 = vector.extract_strided_slice %87 {offsets = [0, 96], sizes = [1, 32], strides = [1, 1]} : vector<1x128xf32> to vector<1x32xf32>
    %95 = math.tanh %94 : vector<1x32xf32>
    %96 = vector.extract_strided_slice %93 {offsets = [0, 0], sizes = [1, 32], strides = [1, 1]} : vector<1x96xf32> to vector<1x32xf32>
    %97 = vector.extract_strided_slice %93 {offsets = [0, 32], sizes = [1, 32], strides = [1, 1]} : vector<1x96xf32> to vector<1x32xf32>
    %98 = vector.extract_strided_slice %93 {offsets = [0, 64], sizes = [1, 32], strides = [1, 1]} : vector<1x96xf32> to vector<1x32xf32>
    %99 = arith.mulf %97, %82 : vector<1x32xf32>
    %100 = arith.mulf %96, %95 : vector<1x32xf32>
    %101 = arith.addf %99, %100 : vector<1x32xf32>
    %102 = math.tanh %101 : vector<1x32xf32>
    %103 = arith.mulf %98, %102 : vector<1x32xf32>
    %104 = vector.extract_strided_slice %5 {offsets = [5, 0], sizes = [1, 128], strides = [1, 1]} : vector<8x128xf32> to vector<1x128xf32>
    %cst_19 = arith.constant dense<0.000000e+00> : vector<1x128xf32>
    %105 = tpu.matmul %103, %6, %cst_19 {dimension_numbers = #tpu.dot_dimension_numbers<[1], [0], [0], [1], [0, 0, 1, 1], [], []>} : vector<1x32xf32>, vector<32x128xf32>, vector<1x128xf32> -> vector<1x128xf32>
    %106 = arith.addf %104, %105 : vector<1x128xf32>
    %107 = vector.extract_strided_slice %106 {offsets = [0, 0], sizes = [1, 96], strides = [1, 1]} : vector<1x128xf32> to vector<1x96xf32>
    %108 = arith.negf %107 : vector<1x96xf32>
    %109 = math.exp %108 : vector<1x96xf32>
    %cst_20 = arith.constant 1.000000e+00 : f32
    %110 = vector.broadcast %cst_20 : f32 to vector<1x96xf32>
    %111 = arith.addf %110, %109 : vector<1x96xf32>
    %112 = arith.divf %110, %111 : vector<1x96xf32>
    %113 = vector.extract_strided_slice %106 {offsets = [0, 96], sizes = [1, 32], strides = [1, 1]} : vector<1x128xf32> to vector<1x32xf32>
    %114 = math.tanh %113 : vector<1x32xf32>
    %115 = vector.extract_strided_slice %112 {offsets = [0, 0], sizes = [1, 32], strides = [1, 1]} : vector<1x96xf32> to vector<1x32xf32>
    %116 = vector.extract_strided_slice %112 {offsets = [0, 32], sizes = [1, 32], strides = [1, 1]} : vector<1x96xf32> to vector<1x32xf32>
    %117 = vector.extract_strided_slice %112 {offsets = [0, 64], sizes = [1, 32], strides = [1, 1]} : vector<1x96xf32> to vector<1x32xf32>
    %118 = arith.mulf %116, %101 : vector<1x32xf32>
    %119 = arith.mulf %115, %114 : vector<1x32xf32>
    %120 = arith.addf %118, %119 : vector<1x32xf32>
    %121 = math.tanh %120 : vector<1x32xf32>
    %122 = arith.mulf %117, %121 : vector<1x32xf32>
    %123 = vector.extract_strided_slice %5 {offsets = [6, 0], sizes = [1, 128], strides = [1, 1]} : vector<8x128xf32> to vector<1x128xf32>
    %cst_21 = arith.constant dense<0.000000e+00> : vector<1x128xf32>
    %124 = tpu.matmul %122, %6, %cst_21 {dimension_numbers = #tpu.dot_dimension_numbers<[1], [0], [0], [1], [0, 0, 1, 1], [], []>} : vector<1x32xf32>, vector<32x128xf32>, vector<1x128xf32> -> vector<1x128xf32>
    %125 = arith.addf %123, %124 : vector<1x128xf32>
    %126 = vector.extract_strided_slice %125 {offsets = [0, 0], sizes = [1, 96], strides = [1, 1]} : vector<1x128xf32> to vector<1x96xf32>
    %127 = arith.negf %126 : vector<1x96xf32>
    %128 = math.exp %127 : vector<1x96xf32>
    %cst_22 = arith.constant 1.000000e+00 : f32
    %129 = vector.broadcast %cst_22 : f32 to vector<1x96xf32>
    %130 = arith.addf %129, %128 : vector<1x96xf32>
    %131 = arith.divf %129, %130 : vector<1x96xf32>
    %132 = vector.extract_strided_slice %125 {offsets = [0, 96], sizes = [1, 32], strides = [1, 1]} : vector<1x128xf32> to vector<1x32xf32>
    %133 = math.tanh %132 : vector<1x32xf32>
    %134 = vector.extract_strided_slice %131 {offsets = [0, 0], sizes = [1, 32], strides = [1, 1]} : vector<1x96xf32> to vector<1x32xf32>
    %135 = vector.extract_strided_slice %131 {offsets = [0, 32], sizes = [1, 32], strides = [1, 1]} : vector<1x96xf32> to vector<1x32xf32>
    %136 = vector.extract_strided_slice %131 {offsets = [0, 64], sizes = [1, 32], strides = [1, 1]} : vector<1x96xf32> to vector<1x32xf32>
    %137 = arith.mulf %135, %120 : vector<1x32xf32>
    %138 = arith.mulf %134, %133 : vector<1x32xf32>
    %139 = arith.addf %137, %138 : vector<1x32xf32>
    %140 = math.tanh %139 : vector<1x32xf32>
    %141 = arith.mulf %136, %140 : vector<1x32xf32>
    %142 = vector.extract_strided_slice %5 {offsets = [7, 0], sizes = [1, 128], strides = [1, 1]} : vector<8x128xf32> to vector<1x128xf32>
    %cst_23 = arith.constant dense<0.000000e+00> : vector<1x128xf32>
    %143 = tpu.matmul %141, %6, %cst_23 {dimension_numbers = #tpu.dot_dimension_numbers<[1], [0], [0], [1], [0, 0, 1, 1], [], []>} : vector<1x32xf32>, vector<32x128xf32>, vector<1x128xf32> -> vector<1x128xf32>
    %144 = arith.addf %142, %143 : vector<1x128xf32>
    %145 = vector.extract_strided_slice %144 {offsets = [0, 0], sizes = [1, 96], strides = [1, 1]} : vector<1x128xf32> to vector<1x96xf32>
    %146 = arith.negf %145 : vector<1x96xf32>
    %147 = math.exp %146 : vector<1x96xf32>
    %cst_24 = arith.constant 1.000000e+00 : f32
    %148 = vector.broadcast %cst_24 : f32 to vector<1x96xf32>
    %149 = arith.addf %148, %147 : vector<1x96xf32>
    %150 = arith.divf %148, %149 : vector<1x96xf32>
    %151 = vector.extract_strided_slice %144 {offsets = [0, 96], sizes = [1, 32], strides = [1, 1]} : vector<1x128xf32> to vector<1x32xf32>
    %152 = math.tanh %151 : vector<1x32xf32>
    %153 = vector.extract_strided_slice %150 {offsets = [0, 0], sizes = [1, 32], strides = [1, 1]} : vector<1x96xf32> to vector<1x32xf32>
    %154 = vector.extract_strided_slice %150 {offsets = [0, 32], sizes = [1, 32], strides = [1, 1]} : vector<1x96xf32> to vector<1x32xf32>
    %155 = vector.extract_strided_slice %150 {offsets = [0, 64], sizes = [1, 32], strides = [1, 1]} : vector<1x96xf32> to vector<1x32xf32>
    %156 = arith.mulf %154, %139 : vector<1x32xf32>
    %157 = arith.mulf %153, %152 : vector<1x32xf32>
    %158 = arith.addf %156, %157 : vector<1x32xf32>
    %159 = math.tanh %158 : vector<1x32xf32>
    %160 = arith.mulf %155, %159 : vector<1x32xf32>
    %161 = tpu.concatenate %27, %46, %65, %84, %103, %122, %141, %160 in 0 : vector<1x32xf32>, vector<1x32xf32>, vector<1x32xf32>, vector<1x32xf32>, vector<1x32xf32>, vector<1x32xf32>, vector<1x32xf32>, vector<1x32xf32> -> vector<8x32xf32>
    %162 = tpu.concatenate %160, %141, %122, %103, %84, %65, %46, %27 in 0 : vector<1x32xf32>, vector<1x32xf32>, vector<1x32xf32>, vector<1x32xf32>, vector<1x32xf32>, vector<1x32xf32>, vector<1x32xf32>, vector<1x32xf32> -> vector<8x32xf32>
    %c0_25 = arith.constant 0 : index
    %c0_26 = arith.constant 0 : index
    %163 = vector.load %arg4[%c0_25, %c0_26] : memref<32x4xf32, #tpu.memory_space<vmem>>, vector<32x4xf32>
    %cst_27 = arith.constant dense<0.000000e+00> : vector<8x4xf32>
    %164 = tpu.matmul %161, %163, %cst_27 {dimension_numbers = #tpu.dot_dimension_numbers<[1], [0], [0], [1], [0, 0, 1, 1], [], []>} : vector<8x32xf32>, vector<32x4xf32>, vector<8x4xf32> -> vector<8x4xf32>
    %c0_28 = arith.constant 0 : index
    %c0_29 = arith.constant 0 : index
    %165 = vector.load %arg5[%c0_28, %c0_29] : memref<32x4xf32, #tpu.memory_space<vmem>>, vector<32x4xf32>
    %cst_30 = arith.constant dense<0.000000e+00> : vector<8x4xf32>
    %166 = tpu.matmul %162, %165, %cst_30 {dimension_numbers = #tpu.dot_dimension_numbers<[1], [0], [0], [1], [0, 0, 1, 1], [], []>} : vector<8x32xf32>, vector<32x4xf32>, vector<8x4xf32> -> vector<8x4xf32>
    %167 = arith.addf %164, %166 : vector<8x4xf32>
    %c0_31 = arith.constant 0 : index
    %c0_32 = arith.constant 0 : index
    %168 = vector.load %arg6[%c0_31, %c0_32] : memref<1x4xf32, #tpu.memory_space<vmem>>, vector<1x4xf32>
    %169 = vector.broadcast %168 : vector<1x4xf32> to vector<8x4xf32>
    %170 = arith.addf %167, %169 : vector<8x4xf32>
    %cst_33 = arith.constant dense<0xFF800000> : vector<8xf32>
    %171 = vector.multi_reduction <maximumf>, %170, %cst_33 [1] : vector<8x4xf32> to vector<8xf32>
    %172 = vector.shape_cast %171 : vector<8xf32> to vector<8x1xf32>
    %173 = vector.broadcast %172 : vector<8x1xf32> to vector<8x4xf32>
    %174 = arith.subf %170, %173 : vector<8x4xf32>
    %175 = math.exp %174 : vector<8x4xf32>
    %cst_34 = arith.constant dense<0.000000e+00> : vector<8xf32>
    %176 = vector.multi_reduction <add>, %175, %cst_34 [1] : vector<8x4xf32> to vector<8xf32>
    %177 = vector.shape_cast %176 : vector<8xf32> to vector<8x1xf32>
    %178 = math.log %177 : vector<8x1xf32>
    %179 = vector.broadcast %178 : vector<8x1xf32> to vector<8x4xf32>
    %180 = arith.subf %174, %179 : vector<8x4xf32>
    %c0_35 = arith.constant 0 : index
    %c0_36 = arith.constant 0 : index
    %181 = vector.load %arg7[%c0_35, %c0_36] : memref<8x4xf32, #tpu.memory_space<vmem>>, vector<8x4xf32>
    tpu.vector_store %arg7[%c0_35, %c0_36], %180 {strides = array<i32>} : memref<8x4xf32, #tpu.memory_space<vmem>>, vector<8x4xf32>,
    return
  }
}

</mosaic_0001>

<llo_original>
// kernel: tpu_custom_call.1
$region0: #{tpu_custom_call.1}
  #allocation0 [shape = 'u32[]', space=smem, size = 0x4, offset = 0x4, fixed_abs, tag = 'smem constant byte address 0x4 - core index']
  #allocation1 [shape = 'u32[144,128]{1,0:T(1,128)}', space=vmem, size = 0x12000, scoped, tag = 'internal scratch']
  %s0 = inlined_call_operand.vmem [shape: f32[8,64], index: 0, kind: input, shape index: {}]
  %s1 = inlined_call_operand.vmem [shape: f32[64,128], index: 1, kind: input, shape index: {}]
  %s2 = inlined_call_operand.hbm [shape: f32[32,128], index: 2, kind: input, shape index: {}]
  %s3 = inlined_call_operand.vmem [shape: f32[1,128], index: 3, kind: input, shape index: {}]
  %s4 = inlined_call_operand.vmem [shape: f32[32,4], index: 4, kind: input, shape index: {}]
  %s5 = inlined_call_operand.vmem [shape: f32[32,4], index: 5, kind: input, shape index: {}]
  %s6 = inlined_call_operand.vmem [shape: f32[1,4], index: 6, kind: input, shape index: {}]
  %s7 = inlined_call_operand.vmem [shape: f32[8,4], index: 7, kind: output, shape index: {}]
  %s8 = sld [smem:[#allocation0]]
  $region42: #{tpu_custom_call.1} parent=0
    _
  %s10 = ssub.s32 1, %s8
  %s11 = scalar_select 0, %s10, %s8
  $region1: #{tpu_custom_call.1} parent=0
    #allocation2 [shape = 'u8[16384]{0}', space=vmem, size = 0x4000, scoped, tag = 'input window, operand 2, single buffered']
    #allocation3 [shape = 's32[1]{0}', space=sflag, size = 0x4, scoped, tag = 'scoped memory for tpu_custom_call.1']
    %12 = vsyncpa [#allocation3], 0
    // Predicated region
    $region2: #{tpu_custom_call.1} parent=1 // pred_check
      _
    $region3: #{tpu_custom_call.1} parent=1 // pred_check_branch
      %14 = sbr.rel (0) target = $region5
    $region4: #{tpu_custom_call.1} parent=1 // pred_region
      _
    $region5: #{tpu_custom_call.1} parent=1 // pred_fallthru
      _
    // Predicated region
    $region6: #{tpu_custom_call.1} parent=1 // pred_check
      _
    $region7: #{tpu_custom_call.1} parent=1 // pred_check_branch
      %16 = sbr.rel (0) target = $region9
    $region8: #{tpu_custom_call.1} parent=1 // pred_region
      _
    $region9: #{tpu_custom_call.1} parent=1 // pred_fallthru
      _
    // Predicated region
    $region10: #{tpu_custom_call.1} parent=1 // pred_check
      _
    $region11: #{tpu_custom_call.1} parent=1 // pred_check_branch
      %18 = sbr.rel (0) target = $region13
    $region12: #{tpu_custom_call.1} parent=1 // pred_region
      %s20 = ssub.s32 512, 512
      %21 = vsyncadd [#allocation3], %s20
      %s22 = sshll.u32 [#allocation2], 4
      %s23 = int_to_ptr.vmem [resolvable:$true] %s22
      %28 = dma.hbm_to_vmem [thread:$0]  %s2, 512, %s23, [#allocation3], 128, 128, 8
    $region13: #{tpu_custom_call.1} parent=1 // pred_fallthru
      _
    // Predicated region
    $region14: #{tpu_custom_call.1} parent=1 // pred_check
      _
    $region15: #{tpu_custom_call.1} parent=1 // pred_check_branch
      %30 = sbr.rel (0) target = $region17
    $region16: #{tpu_custom_call.1} parent=1 // pred_region
      _
    $region17: #{tpu_custom_call.1} parent=1 // pred_fallthru
      _
    // Predicated region
    $region18: #{tpu_custom_call.1} parent=1 // pred_check
      _
    $region19: #{tpu_custom_call.1} parent=1 // pred_check_branch
      %32 = sbr.rel (0) target = $region21
    $region20: #{tpu_custom_call.1} parent=1 // pred_region
      _
    $region21: #{tpu_custom_call.1} parent=1 // pred_fallthru
      _
    // Predicated region
    $region22: #{tpu_custom_call.1} parent=1 // pred_check
      _
    $region23: #{tpu_custom_call.1} parent=1 // pred_check_branch
      %34 = sbr.rel (0) target = $region25
    $region24: #{tpu_custom_call.1} parent=1 // pred_region
      _
    $region25: #{tpu_custom_call.1} parent=1 // pred_fallthru
      _
    // Predicated region
    $region26: #{tpu_custom_call.1} parent=1 // pred_check
      _
    $region27: #{tpu_custom_call.1} parent=1 // pred_check_branch
      %36 = sbr.rel (0) target = $region29
    $region28: #{tpu_custom_call.1} parent=1 // pred_region
      _
    $region29: #{tpu_custom_call.1} parent=1 // pred_fallthru
      _
    // Predicated region
    $region30: #{tpu_custom_call.1} parent=1 // pred_check
      _
    $region31: #{tpu_custom_call.1} parent=1 // pred_check_branch
      %38 = sbr.rel (0) target = $region33
    $region32: #{tpu_custom_call.1} parent=1 // pred_region
      %39 = dma.done [#allocation3], 512
    $region33: #{tpu_custom_call.1} parent=1 // pred_fallthru
      _
    %v40 = vld [vmem:[%s0] sm:$0xff]
    %v41 = vld [vmem:[%s1] sm:$0xff]
    %v42 = vld [vmem:[%s1 + $0x8] sm:$0xff]
    %v43 = vld [vmem:[%s1 + $0x10] sm:$0xff]
    %v44 = vld [vmem:[%s1 + $0x18] sm:$0xff]
    %v45 = vld [vmem:[%s1 + $0x20] sm:$0xff]
    %v46 = vld [vmem:[%s1 + $0x28] sm:$0xff]
    %v47 = vld [vmem:[%s1 + $0x30] sm:$0xff]
    %v48 = vld [vmem:[%s1 + $0x38] sm:$0xff]
    %v49 = vld [vmem:[%s3] sm:$0x1]
    %v51 = vlaneseq
    %v52 = vshrl.u32 %v51, 7
    %v53 = vsub.s32 0, %v52
    %v54 = vrot.slane %v49, %v53
    %vm56 = vcmask 523264
    %v58 = vsel %vm56, %v40, 0
    %60 = vmatprep.subr.mxu0 0.0
    %61 = vmatpush1.msra.mxu0 %v41
    %62 = vmatprep.subr.mxu0 0.0
    %63 = vmatpush1.msra.mxu0 %v42
    %64 = vmatprep.subr.mxu0 0.0
    %65 = vmatpush1.msra.mxu0 %v43
    %66 = vmatprep.subr.mxu0 0.0
    %67 = vmatpush1.msra.mxu0 %v44
    %68 = vmatprep.subr.mxu0 0.0
    %69 = vmatpush1.msra.mxu0 %v45
    %70 = vmatprep.subr.mxu0 0.0
    %71 = vmatpush1.msra.mxu0 %v46
    %72 = vmatprep.subr.mxu0 0.0
    %73 = vmatpush1.msra.mxu0 %v47
    %74 = vmatprep.subr.mxu0 0.0
    %75 = vmatpush1.msra.mxu0 %v48
    %76 = vmatprep.subr.mxu0 0.0
    %77 = vmatpush1.msra.mxu0 0.0
    %78 = vmatprep.subr.mxu0 0.0
    %79 = vmatpush1.msra.mxu0 0.0
    %80 = vmatprep.subr.mxu0 0.0
    %81 = vmatpush1.msra.mxu0 0.0
    %82 = vmatprep.subr.mxu0 0.0
    %83 = vmatpush1.msra.mxu0 0.0
    %84 = vmatprep.subr.mxu0 0.0
    %85 = vmatpush1.msra.mxu0 0.0
    %86 = vmatprep.subr.mxu0 0.0
    %87 = vmatpush1.msra.mxu0 0.0
    %88 = vmatprep.subr.mxu0 0.0
    %89 = vmatpush1.msra.mxu0 0.0
    %90 = vmatprep.subr.mxu0 0.0
    %91 = vmatpush1.msra.mxu0 0.0
    %92 = vmatprep.subr.mxu0 0.0
    %93 = vmatpush1.msra.mxu0 0.0
    %94 = vmatprep.subr.mxu0 0.0
    %95 = vmatpush1.msra.mxu0 0.0
    %96 = vmatprep.subr.mxu0 0.0
    %97 = vmatpush1.msra.mxu0 0.0
    %98 = vmatprep.subr.mxu0 0.0
    %99 = vmatpush1.msra.mxu0 0.0
    %100 = vmatprep.subr.mxu0 0.0
    %101 = vmatpush1.msra.mxu0 0.0
    %102 = vmatprep.subr.mxu0 0.0
    %103 = vmatpush1.msra.mxu0 0.0
    %104 = vmatprep.subr.mxu0 0.0
    %105 = vmatpush1.msra.mxu0 0.0
    %106 = vmatprep.subr.mxu0 0.0
    %107 = vmatpush1.msra.mxu0 0.0
    %108 = vmatprep.subr.mxu0 0.0
    %109 = vmatpush1.msra.mxu0 0.0
    %110 = vmatprep.subr.mxu0 0.0
    %111 = vmatpush1.msra.mxu0 0.0
    %112 = vmatprep.subr.mxu0 0.0
    %113 = vmatpush1.msra.mxu0 0.0
    %114 = vmatprep.subr.mxu0 0.0
    %115 = vmatpush1.msra.mxu0 0.0
    %116 = vmatprep.subr.mxu0 0.0
    %117 = vmatpush1.msra.mxu0 0.0
    %118 = vmatprep.subr.mxu0 0.0
    %119 = vmatpush1.msra.mxu0 0.0
    %120 = vmatprep.subr.mxu0 0.0
    %121 = vmatpush1.msra.mxu0 0.0
    %122 = vmatprep.subr.mxu0 0.0
    %123 = vmatpush1.msra.mxu0 0.0
    %124 = vmatprep.mubr.f32.mxu0 0.0
    %125 = vmatmul.mubr.f32.gmra.mrb[0].mxu0 %v58
    %v126 = vpop.f32.mrb[0].mxu0
    %v127 = vadd.f32 %v54, %v126
    %v128 = vpop.f32.mrb[0].mxu0
    %129 = vdwg.mxu0
    %v130 = vld [vmem:[#allocation2] sm:$0xff]
    %v131 = vld [vmem:[#allocation2 + $0x8] sm:$0xff]
    %v132 = vld [vmem:[#allocation2 + $0x10] sm:$0xff]
    %v133 = vld [vmem:[#allocation2 + $0x18] sm:$0xff]
    %vm134 = vcmask 261120
    %v136 = vsel %vm134, 0.0, 0
    %138 = vmatprep.subr.mxu0 0.0
    %139 = vmatpush1.msra.mxu0 %v130
    %140 = vmatprep.subr.mxu0 0.0
    %141 = vmatpush1.msra.mxu0 %v131
    %142 = vmatprep.subr.mxu0 0.0
    %143 = vmatpush1.msra.mxu0 %v132
    %144 = vmatprep.subr.mxu0 0.0
    %145 = vmatpush1.msra.mxu0 %v133
    %146 = vmatprep.subr.mxu0 0.0
    %147 = vmatpush1.msra.mxu0 0.0
    %148 = vmatprep.subr.mxu0 0.0
    %149 = vmatpush1.msra.mxu0 0.0
    %150 = vmatprep.subr.mxu0 0.0
    %151 = vmatpush1.msra.mxu0 0.0
    %152 = vmatprep.subr.mxu0 0.0
    %153 = vmatpush1.msra.mxu0 0.0
    %154 = vmatprep.subr.mxu0 0.0
    %155 = vmatpush1.msra.mxu0 0.0
    %156 = vmatprep.subr.mxu0 0.0
    %157 = vmatpush1.msra.mxu0 0.0
    %158 = vmatprep.subr.mxu0 0.0
    %159 = vmatpush1.msra.mxu0 0.0
    %160 = vmatprep.subr.mxu0 0.0
    %161 = vmatpush1.msra.mxu0 0.0
    %162 = vmatprep.subr.mxu0 0.0
    %163 = vmatpush1.msra.mxu0 0.0
    %164 = vmatprep.subr.mxu0 0.0
    %165 = vmatpush1.msra.mxu0 0.0
    %166 = vmatprep.subr.mxu0 0.0
    %167 = vmatpush1.msra.mxu0 0.0
    %168 = vmatprep.subr.mxu0 0.0
    %169 = vmatpush1.msra.mxu0 0.0
    %170 = vmatprep.subr.mxu0 0.0
    %171 = vmatpush1.msra.mxu0 0.0
    %172 = vmatprep.subr.mxu0 0.0
    %173 = vmatpush1.msra.mxu0 0.0
    %174 = vmatprep.subr.mxu0 0.0
    %175 = vmatpush1.msra.mxu0 0.0
    %176 = vmatprep.subr.mxu0 0.0
    %177 = vmatpush1.msra.mxu0 0.0
    %178 = vmatprep.subr.mxu0 0.0
    %179 = vmatpush1.msra.mxu0 0.0
    %180 = vmatprep.subr.mxu0 0.0
    %181 = vmatpush1.msra.mxu0 0.0
    %182 = vmatprep.subr.mxu0 0.0
    %183 = vmatpush1.msra.mxu0 0.0
    %184 = vmatprep.subr.mxu0 0.0
    %185 = vmatpush1.msra.mxu0 0.0
    %186 = vmatprep.subr.mxu0 0.0
    %187 = vmatpush1.msra.mxu0 0.0
    %188 = vmatprep.subr.mxu0 0.0
    %189 = vmatpush1.msra.mxu0 0.0
    %190 = vmatprep.subr.mxu0 0.0
    %191 = vmatpush1.msra.mxu0 0.0
    %192 = vmatprep.subr.mxu0 0.0
    %193 = vmatpush1.msra.mxu0 0.0
    %194 = vmatprep.subr.mxu0 0.0
    %195 = vmatpush1.msra.mxu0 0.0
    %196 = vmatprep.subr.mxu0 0.0
    %197 = vmatpush1.msra.mxu0 0.0
    %198 = vmatprep.subr.mxu0 0.0
    %199 = vmatpush1.msra.mxu0 0.0
    %200 = vmatprep.subr.mxu0 0.0
    %201 = vmatpush1.msra.mxu0 0.0
    %202 = vmatprep.mubr.f32.mxu0 0.0
    %203 = vmatmul.mubr.f32.gmra.mrb[0].mxu0 %v136
    %v204 = vpop.f32.mrb[0].mxu0
    %v205 = vadd.f32 0.0, %v204
    %v206 = vpop.f32.mrb[0].mxu0
    %207 = vdwg.mxu0
    %v208 = vadd.f32 %v127, %v205
    %v209 = vxor.u32 %v208, 2147483648
    %v210 = vmul.f32 %v209, 1.442695
    %v211 = vpow.pop %v210
    %v212 = vadd.f32 %v211, 1.0
    %v213 = vrcp.pop %v212
    %v214 = vmul.f32 1.0, %v213
    %v215 = vtanh.pop %v208
    %v216 = vmul.f32 %v214, 0.0
    %218 = vrot.lane.b32.xlu0 %v215, 32
    %v219 = vpop.permute.xlu0 %218
    %v221 = vmul.f32 %v214, %v219
    %223 = vrot.lane.b32.xlu0 %v221, 32
    %v224 = vpop.permute.xlu0 %223
    %v226 = vadd.f32 %v216, %v224
    %v227 = vtanh.pop %v226
    %229 = vrot.lane.b32.xlu0 %v227, 32
    %v230 = vpop.permute.xlu0 %229
    %v232 = vmul.f32 %v214, %v230
    %234 = vrot.lane.b32.xlu0 %v232, 64
    %v235 = vpop.permute.xlu0 %234
    %v236 = vsel %vm134, %v235, 0
    %238 = vmatprep.subr.mxu0 0.0
    %239 = vmatpush1.msra.mxu0 %v130
    %240 = vmatprep.subr.mxu0 0.0
    %241 = vmatpush1.msra.mxu0 %v131
    %242 = vmatprep.subr.mxu0 0.0
    %243 = vmatpush1.msra.mxu0 %v132
    %244 = vmatprep.subr.mxu0 0.0
    %245 = vmatpush1.msra.mxu0 %v133
    %246 = vmatprep.subr.mxu0 0.0
    %247 = vmatpush1.msra.mxu0 0.0
    %248 = vmatprep.subr.mxu0 0.0
    %249 = vmatpush1.msra.mxu0 0.0
    %250 = vmatprep.subr.mxu0 0.0
    %251 = vmatpush1.msra.mxu0 0.0
    %252 = vmatprep.subr.mxu0 0.0
    %253 = vmatpush1.msra.mxu0 0.0
    %254 = vmatprep.subr.mxu0 0.0
    %255 = vmatpush1.msra.mxu0 0.0
    %256 = vmatprep.subr.mxu0 0.0
    %257 = vmatpush1.msra.mxu0 0.0
    %258 = vmatprep.subr.mxu0 0.0
    %259 = vmatpush1.msra.mxu0 0.0
    %260 = vmatprep.subr.mxu0 0.0
    %261 = vmatpush1.msra.mxu0 0.0
    %262 = vmatprep.subr.mxu0 0.0
    %263 = vmatpush1.msra.mxu0 0.0
    %264 = vmatprep.subr.mxu0 0.0
    %265 = vmatpush1.msra.mxu0 0.0
    %266 = vmatprep.subr.mxu0 0.0
    %267 = vmatpush1.msra.mxu0 0.0
    %268 = vmatprep.subr.mxu0 0.0
    %269 = vmatpush1.msra.mxu0 0.0
    %270 = vmatprep.subr.mxu0 0.0
    %271 = vmatpush1.msra.mxu0 0.0
    %272 = vmatprep.subr.mxu0 0.0
    %273 = vmatpush1.msra.mxu0 0.0
    %274 = vmatprep.subr.mxu0 0.0
    %275 = vmatpush1.msra.mxu0 0.0
    %276 = vmatprep.subr.mxu0 0.0
    %277 = vmatpush1.msra.mxu0 0.0
    %278 = vmatprep.subr.mxu0 0.0
    %279 = vmatpush1.msra.mxu0 0.0
    %280 = vmatprep.subr.mxu0 0.0
    %281 = vmatpush1.msra.mxu0 0.0
    %282 = vmatprep.subr.mxu0 0.0
    %283 = vmatpush1.msra.mxu0 0.0
    %284 = vmatprep.subr.mxu0 0.0
    %285 = vmatpush1.msra.mxu0 0.0
    %286 = vmatprep.subr.mxu0 0.0
    %287 = vmatpush1.msra.mxu0 0.0
    %288 = vmatprep.subr.mxu0 0.0
    %289 = vmatpush1.msra.mxu0 0.0
    %290 = vmatprep.subr.mxu0 0.0
    %291 = vmatpush1.msra.mxu0 0.0
    %292 = vmatprep.subr.mxu0 0.0
    %293 = vmatpush1.msra.mxu0 0.0
    %294 = vmatprep.subr.mxu0 0.0
    %295 = vmatpush1.msra.mxu0 0.0
    %296 = vmatprep.subr.mxu0 0.0
    %297 = vmatpush1.msra.mxu0 0.0
    %298 = vmatprep.subr.mxu0 0.0
    %299 = vmatpush1.msra.mxu0 0.0
    %300 = vmatprep.subr.mxu0 0.0
    %301 = vmatpush1.msra.mxu0 0.0
    %302 = vmatprep.mubr.f32.mxu0 0.0
    %303 = vmatmul.mubr.f32.gmra.mrb[0].mxu0 %v236
    %v304 = vpop.f32.mrb[0].mxu0
    %v305 = vadd.f32 0.0, %v304
    %v306 = vpop.f32.mrb[0].mxu0
    %307 = vdwg.mxu0
    %v309 = vrot.slane %v305, 7
    %v311 = vadd.f32 %v127, %v309
    %v312 = vxor.u32 %v311, 2147483648
    %v313 = vmul.f32 %v312, 1.442695
    %v314 = vpow.pop %v313
    %v315 = vadd.f32 %v314, 1.0
    %v316 = vrcp.pop %v315
    %v317 = vmul.f32 1.0, %v316
    %v318 = vtanh.pop %v311
    %v320 = vrot.slane %v226, 7
    %v322 = vmul.f32 %v317, %v320
    %324 = vrot.lane.b32.xlu0 %v318, 32
    %v325 = vpop.permute.xlu0 %324
    %v327 = vmul.f32 %v317, %v325
    %329 = vrot.lane.b32.xlu0 %v327, 32
    %v330 = vpop.permute.xlu0 %329
    %v332 = vadd.f32 %v322, %v330
    %v333 = vtanh.pop %v332
    %335 = vrot.lane.b32.xlu0 %v333, 32
    %v336 = vpop.permute.xlu0 %335
    %v338 = vmul.f32 %v317, %v336
    %v340 = vrot.slane %v338, 1
    %341 = vrot.lane.b32.xlu0 %v340, 64
    %v342 = vpop.permute.xlu0 %341
    %v343 = vsel %vm134, %v342, 0
    %345 = vmatprep.subr.mxu0 0.0
    %346 = vmatpush1.msra.mxu0 %v130
    %347 = vmatprep.subr.mxu0 0.0
    %348 = vmatpush1.msra.mxu0 %v131
    %349 = vmatprep.subr.mxu0 0.0
    %350 = vmatpush1.msra.mxu0 %v132
    %351 = vmatprep.subr.mxu0 0.0
    %352 = vmatpush1.msra.mxu0 %v133
    %353 = vmatprep.subr.mxu0 0.0
    %354 = vmatpush1.msra.mxu0 0.0
    %355 = vmatprep.subr.mxu0 0.0
    %356 = vmatpush1.msra.mxu0 0.0
    %357 = vmatprep.subr.mxu0 0.0
    %358 = vmatpush1.msra.mxu0 0.0
    %359 = vmatprep.subr.mxu0 0.0
    %360 = vmatpush1.msra.mxu0 0.0
    %361 = vmatprep.subr.mxu0 0.0
    %362 = vmatpush1.msra.mxu0 0.0
    %363 = vmatprep.subr.mxu0 0.0
    %364 = vmatpush1.msra.mxu0 0.0
    %365 = vmatprep.subr.mxu0 0.0
    %366 = vmatpush1.msra.mxu0 0.0
    %367 = vmatprep.subr.mxu0 0.0
    %368 = vmatpush1.msra.mxu0 0.0
    %369 = vmatprep.subr.mxu0 0.0
    %370 = vmatpush1.msra.mxu0 0.0
    %371 = vmatprep.subr.mxu0 0.0
    %372 = vmatpush1.msra.mxu0 0.0
    %373 = vmatprep.subr.mxu0 0.0
    %374 = vmatpush1.msra.mxu0 0.0
    %375 = vmatprep.subr.mxu0 0.0
    %376 = vmatpush1.msra.mxu0 0.0
    %377 = vmatprep.subr.mxu0 0.0
    %378 = vmatpush1.msra.mxu0 0.0
    %379 = vmatprep.subr.mxu0 0.0
    %380 = vmatpush1.msra.mxu0 0.0
    %381 = vmatprep.subr.mxu0 0.0
    %382 = vmatpush1.msra.mxu0 0.0
    %383 = vmatprep.subr.mxu0 0.0
    %384 = vmatpush1.msra.mxu0 0.0
    %385 = vmatprep.subr.mxu0 0.0
    %386 = vmatpush1.msra.mxu0 0.0
    %387 = vmatprep.subr.mxu0 0.0
    %388 = vmatpush1.msra.mxu0 0.0
    %389 = vmatprep.subr.mxu0 0.0
    %390 = vmatpush1.msra.mxu0 0.0
    %391 = vmatprep.subr.mxu0 0.0
    %392 = vmatpush1.msra.mxu0 0.0
    %393 = vmatprep.subr.mxu0 0.0
    %394 = vmatpush1.msra.mxu0 0.0
    %395 = vmatprep.subr.mxu0 0.0
    %396 = vmatpush1.msra.mxu0 0.0
    %397 = vmatprep.subr.mxu0 0.0
    %398 = vmatpush1.msra.mxu0 0.0
    %399 = vmatprep.subr.mxu0 0.0
    %400 = vmatpush1.msra.mxu0 0.0
    %401 = vmatprep.subr.mxu0 0.0
    %402 = vmatpush1.msra.mxu0 0.0
    %403 = vmatprep.subr.mxu0 0.0
    %404 = vmatpush1.msra.mxu0 0.0
    %405 = vmatprep.subr.mxu0 0.0
    %406 = vmatpush1.msra.mxu0 0.0
    %407 = vmatprep.subr.mxu0 0.0
    %408 = vmatpush1.msra.mxu0 0.0
    %409 = vmatprep.mubr.f32.mxu0 0.0
    %410 = vmatmul.mubr.f32.gmra.mrb[0].mxu0 %v343
    %v411 = vpop.f32.mrb[0].mxu0
    %v412 = vadd.f32 0.0, %v411
    %v413 = vpop.f32.mrb[0].mxu0
    %414 = vdwg.mxu0
    %v416 = vrot.slane %v412, 6
    %v418 = vadd.f32 %v127, %v416
    %v419 = vxor.u32 %v418, 2147483648
    %v420 = vmul.f32 %v419, 1.442695
    %v421 = vpow.pop %v420
    %v422 = vadd.f32 %v421, 1.0
    %v423 = vrcp.pop %v422
    %v424 = vmul.f32 1.0, %v423
    %v425 = vtanh.pop %v418
    %v427 = vrot.slane %v332, 7
    %v429 = vmul.f32 %v424, %v427
    %431 = vrot.lane.b32.xlu0 %v425, 32
    %v432 = vpop.permute.xlu0 %431
    %v434 = vmul.f32 %v424, %v432
    %436 = vrot.lane.b32.xlu0 %v434, 32
    %v437 = vpop.permute.xlu0 %436
    %v439 = vadd.f32 %v429, %v437
    %v440 = vtanh.pop %v439
    %442 = vrot.lane.b32.xlu0 %v440, 32
    %v443 = vpop.permute.xlu0 %442
    %v445 = vmul.f32 %v424, %v443
    %v447 = vrot.slane %v445, 2
    %448 = vrot.lane.b32.xlu0 %v447, 64
    %v449 = vpop.permute.xlu0 %448
    %v450 = vsel %vm134, %v449, 0
    %452 = vmatprep.subr.mxu0 0.0
    %453 = vmatpush1.msra.mxu0 %v130
    %454 = vmatprep.subr.mxu0 0.0
    %455 = vmatpush1.msra.mxu0 %v131
    %456 = vmatprep.subr.mxu0 0.0
    %457 = vmatpush1.msra.mxu0 %v132
    %458 = vmatprep.subr.mxu0 0.0
    %459 = vmatpush1.msra.mxu0 %v133
    %460 = vmatprep.subr.mxu0 0.0
    %461 = vmatpush1.msra.mxu0 0.0
    %462 = vmatprep.subr.mxu0 0.0
    %463 = vmatpush1.msra.mxu0 0.0
    %464 = vmatprep.subr.mxu0 0.0
    %465 = vmatpush1.msra.mxu0 0.0
    %466 = vmatprep.subr.mxu0 0.0
    %467 = vmatpush1.msra.mxu0 0.0
    %468 = vmatprep.subr.mxu0 0.0
    %469 = vmatpush1.msra.mxu0 0.0
    %470 = vmatprep.subr.mxu0 0.0
    %471 = vmatpush1.msra.mxu0 0.0
    %472 = vmatprep.subr.mxu0 0.0
    %473 = vmatpush1.msra.mxu0 0.0
    %474 = vmatprep.subr.mxu0 0.0
    %475 = vmatpush1.msra.mxu0 0.0
    %476 = vmatprep.subr.mxu0 0.0
    %477 = vmatpush1.msra.mxu0 0.0
    %478 = vmatprep.subr.mxu0 0.0
    %479 = vmatpush1.msra.mxu0 0.0
    %480 = vmatprep.subr.mxu0 0.0
    %481 = vmatpush1.msra.mxu0 0.0
    %482 = vmatprep.subr.mxu0 0.0
    %483 = vmatpush1.msra.mxu0 0.0
    %484 = vmatprep.subr.mxu0 0.0
    %485 = vmatpush1.msra.mxu0 0.0
    %486 = vmatprep.subr.mxu0 0.0
    %487 = vmatpush1.msra.mxu0 0.0
    %488 = vmatprep.subr.mxu0 0.0
    %489 = vmatpush1.msra.mxu0 0.0
    %490 = vmatprep.subr.mxu0 0.0
    %491 = vmatpush1.msra.mxu0 0.0
    %492 = vmatprep.subr.mxu0 0.0
    %493 = vmatpush1.msra.mxu0 0.0
    %494 = vmatprep.subr.mxu0 0.0
    %495 = vmatpush1.msra.mxu0 0.0
    %496 = vmatprep.subr.mxu0 0.0
    %497 = vmatpush1.msra.mxu0 0.0
    %498 = vmatprep.subr.mxu0 0.0
    %499 = vmatpush1.msra.mxu0 0.0
    %500 = vmatprep.subr.mxu0 0.0
    %501 = vmatpush1.msra.mxu0 0.0
    %502 = vmatprep.subr.mxu0 0.0
    %503 = vmatpush1.msra.mxu0 0.0
    %504 = vmatprep.subr.mxu0 0.0
    %505 = vmatpush1.msra.mxu0 0.0
    %506 = vmatprep.subr.mxu0 0.0
    %507 = vmatpush1.msra.mxu0 0.0
    %508 = vmatprep.subr.mxu0 0.0
    %509 = vmatpush1.msra.mxu0 0.0
    %510 = vmatprep.subr.mxu0 0.0
    %511 = vmatpush1.msra.mxu0 0.0
    %512 = vmatprep.subr.mxu0 0.0
    %513 = vmatpush1.msra.mxu0 0.0
    %514 = vmatprep.subr.mxu0 0.0
    %515 = vmatpush1.msra.mxu0 0.0
    %516 = vmatprep.mubr.f32.mxu0 0.0
    %517 = vmatmul.mubr.f32.gmra.mrb[0].mxu0 %v450
    %v518 = vpop.f32.mrb[0].mxu0
    %v519 = vadd.f32 0.0, %v518
    %v520 = vpop.f32.mrb[0].mxu0
    %521 = vdwg.mxu0
    %v523 = vrot.slane %v519, 5
    %v525 = vadd.f32 %v127, %v523
    %v526 = vxor.u32 %v525, 2147483648
    %v527 = vmul.f32 %v526, 1.442695
    %v528 = vpow.pop %v527
    %v529 = vadd.f32 %v528, 1.0
    %v530 = vrcp.pop %v529
    %v531 = vmul.f32 1.0, %v530
    %v532 = vtanh.pop %v525
    %v534 = vrot.slane %v439, 7
    %v536 = vmul.f32 %v531, %v534
    %538 = vrot.lane.b32.xlu0 %v532, 32
    %v539 = vpop.permute.xlu0 %538
    %v541 = vmul.f32 %v531, %v539
    %543 = vrot.lane.b32.xlu0 %v541, 32
    %v544 = vpop.permute.xlu0 %543
    %v546 = vadd.f32 %v536, %v544
    %v547 = vtanh.pop %v546
    %549 = vrot.lane.b32.xlu0 %v547, 32
    %v550 = vpop.permute.xlu0 %549
    %v552 = vmul.f32 %v531, %v550
    %v554 = vrot.slane %v552, 3
    %555 = vrot.lane.b32.xlu0 %v554, 64
    %v556 = vpop.permute.xlu0 %555
    %v557 = vsel %vm134, %v556, 0
    %559 = vmatprep.subr.mxu0 0.0
    %560 = vmatpush1.msra.mxu0 %v130
    %561 = vmatprep.subr.mxu0 0.0
    %562 = vmatpush1.msra.mxu0 %v131
    %563 = vmatprep.subr.mxu0 0.0
    %564 = vmatpush1.msra.mxu0 %v132
    %565 = vmatprep.subr.mxu0 0.0
    %566 = vmatpush1.msra.mxu0 %v133
    %567 = vmatprep.subr.mxu0 0.0
    %568 = vmatpush1.msra.mxu0 0.0
    %569 = vmatprep.subr.mxu0 0.0
    %570 = vmatpush1.msra.mxu0 0.0
    %571 = vmatprep.subr.mxu0 0.0
    %572 = vmatpush1.msra.mxu0 0.0
    %573 = vmatprep.subr.mxu0 0.0
    %574 = vmatpush1.msra.mxu0 0.0
    %575 = vmatprep.subr.mxu0 0.0
    %576 = vmatpush1.msra.mxu0 0.0
    %577 = vmatprep.subr.mxu0 0.0
    %578 = vmatpush1.msra.mxu0 0.0
    %579 = vmatprep.subr.mxu0 0.0
    %580 = vmatpush1.msra.mxu0 0.0
    %581 = vmatprep.subr.mxu0 0.0
    %582 = vmatpush1.msra.mxu0 0.0
    %583 = vmatprep.subr.mxu0 0.0
    %584 = vmatpush1.msra.mxu0 0.0
    %585 = vmatprep.subr.mxu0 0.0
    %586 = vmatpush1.msra.mxu0 0.0
    %587 = vmatprep.subr.mxu0 0.0
    %588 = vmatpush1.msra.mxu0 0.0
    %589 = vmatprep.subr.mxu0 0.0
    %590 = vmatpush1.msra.mxu0 0.0
    %591 = vmatprep.subr.mxu0 0.0
    %592 = vmatpush1.msra.mxu0 0.0
    %593 = vmatprep.subr.mxu0 0.0
    %594 = vmatpush1.msra.mxu0 0.0
    %595 = vmatprep.subr.mxu0 0.0
    %596 = vmatpush1.msra.mxu0 0.0
    %597 = vmatprep.subr.mxu0 0.0
    %598 = vmatpush1.msra.mxu0 0.0
    %599 = vmatprep.subr.mxu0 0.0
    %600 = vmatpush1.msra.mxu0 0.0
    %601 = vmatprep.subr.mxu0 0.0
    %602 = vmatpush1.msra.mxu0 0.0
    %603 = vmatprep.subr.mxu0 0.0
    %604 = vmatpush1.msra.mxu0 0.0
    %605 = vmatprep.subr.mxu0 0.0
    %606 = vmatpush1.msra.mxu0 0.0
    %607 = vmatprep.subr.mxu0 0.0
    %608 = vmatpush1.msra.mxu0 0.0
    %609 = vmatprep.subr.mxu0 0.0
    %610 = vmatpush1.msra.mxu0 0.0
    %611 = vmatprep.subr.mxu0 0.0
    %612 = vmatpush1.msra.mxu0 0.0
    %613 = vmatprep.subr.mxu0 0.0
    %614 = vmatpush1.msra.mxu0 0.0
    %615 = vmatprep.subr.mxu0 0.0
    %616 = vmatpush1.msra.mxu0 0.0
    %617 = vmatprep.subr.mxu0 0.0
    %618 = vmatpush1.msra.mxu0 0.0
    %619 = vmatprep.subr.mxu0 0.0
    %620 = vmatpush1.msra.mxu0 0.0
    %621 = vmatprep.subr.mxu0 0.0
    %622 = vmatpush1.msra.mxu0 0.0
    %623 = vmatprep.mubr.f32.mxu0 0.0
    %624 = vmatmul.mubr.f32.gmra.mrb[0].mxu0 %v557
    %v625 = vpop.f32.mrb[0].mxu0
    %v626 = vadd.f32 0.0, %v625
    %v627 = vpop.f32.mrb[0].mxu0
    %628 = vdwg.mxu0
    %v630 = vrot.slane %v626, 4
    %v632 = vadd.f32 %v127, %v630
    %v633 = vxor.u32 %v632, 2147483648
    %v634 = vmul.f32 %v633, 1.442695
    %v635 = vpow.pop %v634
    %v636 = vadd.f32 %v635, 1.0
    %v637 = vrcp.pop %v636
    %v638 = vmul.f32 1.0, %v637
    %v639 = vtanh.pop %v632
    %v641 = vrot.slane %v546, 7
    %v643 = vmul.f32 %v638, %v641
    %645 = vrot.lane.b32.xlu0 %v639, 32
    %v646 = vpop.permute.xlu0 %645
    %v648 = vmul.f32 %v638, %v646
    %650 = vrot.lane.b32.xlu0 %v648, 32
    %v651 = vpop.permute.xlu0 %650
    %v653 = vadd.f32 %v643, %v651
    %v654 = vtanh.pop %v653
    %656 = vrot.lane.b32.xlu0 %v654, 32
    %v657 = vpop.permute.xlu0 %656
    %v659 = vmul.f32 %v638, %v657
    %v661 = vrot.slane %v659, 4
    %662 = vrot.lane.b32.xlu0 %v661, 64
    %v663 = vpop.permute.xlu0 %662
    %v664 = vsel %vm134, %v663, 0
    %666 = vmatprep.subr.mxu0 0.0
    %667 = vmatpush1.msra.mxu0 %v130
    %668 = vmatprep.subr.mxu0 0.0
    %669 = vmatpush1.msra.mxu0 %v131
    %670 = vmatprep.subr.mxu0 0.0
    %671 = vmatpush1.msra.mxu0 %v132
    %672 = vmatprep.subr.mxu0 0.0
    %673 = vmatpush1.msra.mxu0 %v133
    %674 = vmatprep.subr.mxu0 0.0
    %675 = vmatpush1.msra.mxu0 0.0
    %676 = vmatprep.subr.mxu0 0.0
    %677 = vmatpush1.msra.mxu0 0.0
    %678 = vmatprep.subr.mxu0 0.0
    %679 = vmatpush1.msra.mxu0 0.0
    %680 = vmatprep.subr.mxu0 0.0
    %681 = vmatpush1.msra.mxu0 0.0
    %682 = vmatprep.subr.mxu0 0.0
    %683 = vmatpush1.msra.mxu0 0.0
    %684 = vmatprep.subr.mxu0 0.0
    %685 = vmatpush1.msra.mxu0 0.0
    %686 = vmatprep.subr.mxu0 0.0
    %687 = vmatpush1.msra.mxu0 0.0
    %688 = vmatprep.subr.mxu0 0.0
    %689 = vmatpush1.msra.mxu0 0.0
    %690 = vmatprep.subr.mxu0 0.0
    %691 = vmatpush1.msra.mxu0 0.0
    %692 = vmatprep.subr.mxu0 0.0
    %693 = vmatpush1.msra.mxu0 0.0
    %694 = vmatprep.subr.mxu0 0.0
    %695 = vmatpush1.msra.mxu0 0.0
    %696 = vmatprep.subr.mxu0 0.0
    %697 = vmatpush1.msra.mxu0 0.0
    %698 = vmatprep.subr.mxu0 0.0
    %699 = vmatpush1.msra.mxu0 0.0
    %700 = vmatprep.subr.mxu0 0.0
    %701 = vmatpush1.msra.mxu0 0.0
    %702 = vmatprep.subr.mxu0 0.0
    %703 = vmatpush1.msra.mxu0 0.0
    %704 = vmatprep.subr.mxu0 0.0
    %705 = vmatpush1.msra.mxu0 0.0
    %706 = vmatprep.subr.mxu0 0.0
    %707 = vmatpush1.msra.mxu0 0.0
    %708 = vmatprep.subr.mxu0 0.0
    %709 = vmatpush1.msra.mxu0 0.0
    %710 = vmatprep.subr.mxu0 0.0
    %711 = vmatpush1.msra.mxu0 0.0
    %712 = vmatprep.subr.mxu0 0.0
    %713 = vmatpush1.msra.mxu0 0.0
    %714 = vmatprep.subr.mxu0 0.0
    %715 = vmatpush1.msra.mxu0 0.0
    %716 = vmatprep.subr.mxu0 0.0
    %717 = vmatpush1.msra.mxu0 0.0
    %718 = vmatprep.subr.mxu0 0.0
    %719 = vmatpush1.msra.mxu0 0.0
    %720 = vmatprep.subr.mxu0 0.0
    %721 = vmatpush1.msra.mxu0 0.0
    %722 = vmatprep.subr.mxu0 0.0
    %723 = vmatpush1.msra.mxu0 0.0
    %724 = vmatprep.subr.mxu0 0.0
    %725 = vmatpush1.msra.mxu0 0.0
    %726 = vmatprep.subr.mxu0 0.0
    %727 = vmatpush1.msra.mxu0 0.0
    %728 = vmatprep.subr.mxu0 0.0
    %729 = vmatpush1.msra.mxu0 0.0
    %730 = vmatprep.mubr.f32.mxu0 0.0
    %731 = vmatmul.mubr.f32.gmra.mrb[0].mxu0 %v664
    %v732 = vpop.f32.mrb[0].mxu0
    %v733 = vadd.f32 0.0, %v732
    %v734 = vpop.f32.mrb[0].mxu0
    %735 = vdwg.mxu0
    %v737 = vrot.slane %v733, 3
    %v739 = vadd.f32 %v127, %v737
    %v740 = vxor.u32 %v739, 2147483648
    %v741 = vmul.f32 %v740, 1.442695
    %v742 = vpow.pop %v741
    %v743 = vadd.f32 %v742, 1.0
    %v744 = vrcp.pop %v743
    %v745 = vmul.f32 1.0, %v744
    %v746 = vtanh.pop %v739
    %v748 = vrot.slane %v653, 7
    %v750 = vmul.f32 %v745, %v748
    %752 = vrot.lane.b32.xlu0 %v746, 32
    %v753 = vpop.permute.xlu0 %752
    %v755 = vmul.f32 %v745, %v753
    %757 = vrot.lane.b32.xlu0 %v755, 32
    %v758 = vpop.permute.xlu0 %757
    %v760 = vadd.f32 %v750, %v758
    %v761 = vtanh.pop %v760
    %763 = vrot.lane.b32.xlu0 %v761, 32
    %v764 = vpop.permute.xlu0 %763
    %v766 = vmul.f32 %v745, %v764
    %v768 = vrot.slane %v766, 5
    %769 = vrot.lane.b32.xlu0 %v768, 64
    %v770 = vpop.permute.xlu0 %769
    %v771 = vsel %vm134, %v770, 0
    %773 = vmatprep.subr.mxu0 0.0
    %774 = vmatpush1.msra.mxu0 %v130
    %775 = vmatprep.subr.mxu0 0.0
    %776 = vmatpush1.msra.mxu0 %v131
    %777 = vmatprep.subr.mxu0 0.0
    %778 = vmatpush1.msra.mxu0 %v132
    %779 = vmatprep.subr.mxu0 0.0
    %780 = vmatpush1.msra.mxu0 %v133
    %781 = vmatprep.subr.mxu0 0.0
    %782 = vmatpush1.msra.mxu0 0.0
    %783 = vmatprep.subr.mxu0 0.0
    %784 = vmatpush1.msra.mxu0 0.0
    %785 = vmatprep.subr.mxu0 0.0
    %786 = vmatpush1.msra.mxu0 0.0
    %787 = vmatprep.subr.mxu0 0.0
    %788 = vmatpush1.msra.mxu0 0.0
    %789 = vmatprep.subr.mxu0 0.0
    %790 = vmatpush1.msra.mxu0 0.0
    %791 = vmatprep.subr.mxu0 0.0
    %792 = vmatpush1.msra.mxu0 0.0
    %793 = vmatprep.subr.mxu0 0.0
    %794 = vmatpush1.msra.mxu0 0.0
    %795 = vmatprep.subr.mxu0 0.0
    %796 = vmatpush1.msra.mxu0 0.0
    %797 = vmatprep.subr.mxu0 0.0
    %798 = vmatpush1.msra.mxu0 0.0
    %799 = vmatprep.subr.mxu0 0.0
    %800 = vmatpush1.msra.mxu0 0.0
    %801 = vmatprep.subr.mxu0 0.0
    %802 = vmatpush1.msra.mxu0 0.0
    %803 = vmatprep.subr.mxu0 0.0
    %804 = vmatpush1.msra.mxu0 0.0
    %805 = vmatprep.subr.mxu0 0.0
    %806 = vmatpush1.msra.mxu0 0.0
    %807 = vmatprep.subr.mxu0 0.0
    %808 = vmatpush1.msra.mxu0 0.0
    %809 = vmatprep.subr.mxu0 0.0
    %810 = vmatpush1.msra.mxu0 0.0
    %811 = vmatprep.subr.mxu0 0.0
    %812 = vmatpush1.msra.mxu0 0.0
    %813 = vmatprep.subr.mxu0 0.0
    %814 = vmatpush1.msra.mxu0 0.0
    %815 = vmatprep.subr.mxu0 0.0
    %816 = vmatpush1.msra.mxu0 0.0
    %817 = vmatprep.subr.mxu0 0.0
    %818 = vmatpush1.msra.mxu0 0.0
    %819 = vmatprep.subr.mxu0 0.0
    %820 = vmatpush1.msra.mxu0 0.0
    %821 = vmatprep.subr.mxu0 0.0
    %822 = vmatpush1.msra.mxu0 0.0
    %823 = vmatprep.subr.mxu0 0.0
    %824 = vmatpush1.msra.mxu0 0.0
    %825 = vmatprep.subr.mxu0 0.0
    %826 = vmatpush1.msra.mxu0 0.0
    %827 = vmatprep.subr.mxu0 0.0
    %828 = vmatpush1.msra.mxu0 0.0
    %829 = vmatprep.subr.mxu0 0.0
    %830 = vmatpush1.msra.mxu0 0.0
    %831 = vmatprep.subr.mxu0 0.0
    %832 = vmatpush1.msra.mxu0 0.0
    %833 = vmatprep.subr.mxu0 0.0
    %834 = vmatpush1.msra.mxu0 0.0
    %835 = vmatprep.subr.mxu0 0.0
    %836 = vmatpush1.msra.mxu0 0.0
    %837 = vmatprep.mubr.f32.mxu0 0.0
    %838 = vmatmul.mubr.f32.gmra.mrb[0].mxu0 %v771
    %v839 = vpop.f32.mrb[0].mxu0
    %v840 = vadd.f32 0.0, %v839
    %v841 = vpop.f32.mrb[0].mxu0
    %842 = vdwg.mxu0
    %v844 = vrot.slane %v840, 2
    %v846 = vadd.f32 %v127, %v844
    %v847 = vxor.u32 %v846, 2147483648
    %v848 = vmul.f32 %v847, 1.442695
    %v849 = vpow.pop %v848
    %v850 = vadd.f32 %v849, 1.0
    %v851 = vrcp.pop %v850
    %v852 = vmul.f32 1.0, %v851
    %v853 = vtanh.pop %v846
    %v855 = vrot.slane %v760, 7
    %v857 = vmul.f32 %v852, %v855
    %859 = vrot.lane.b32.xlu0 %v853, 32
    %v860 = vpop.permute.xlu0 %859
    %v862 = vmul.f32 %v852, %v860
    %864 = vrot.lane.b32.xlu0 %v862, 32
    %v865 = vpop.permute.xlu0 %864
    %v867 = vadd.f32 %v857, %v865
    %v868 = vtanh.pop %v867
    %870 = vrot.lane.b32.xlu0 %v868, 32
    %v871 = vpop.permute.xlu0 %870
    %v873 = vmul.f32 %v852, %v871
    %v875 = vrot.slane %v873, 6
    %876 = vrot.lane.b32.xlu0 %v875, 64
    %v877 = vpop.permute.xlu0 %876
    %v878 = vsel %vm134, %v877, 0
    %880 = vmatprep.subr.mxu0 0.0
    %881 = vmatpush1.msra.mxu0 %v130
    %882 = vmatprep.subr.mxu0 0.0
    %883 = vmatpush1.msra.mxu0 %v131
    %884 = vmatprep.subr.mxu0 0.0
    %885 = vmatpush1.msra.mxu0 %v132
    %886 = vmatprep.subr.mxu0 0.0
    %887 = vmatpush1.msra.mxu0 %v133
    %888 = vmatprep.subr.mxu0 0.0
    %889 = vmatpush1.msra.mxu0 0.0
    %890 = vmatprep.subr.mxu0 0.0
    %891 = vmatpush1.msra.mxu0 0.0
    %892 = vmatprep.subr.mxu0 0.0
    %893 = vmatpush1.msra.mxu0 0.0
    %894 = vmatprep.subr.mxu0 0.0
    %895 = vmatpush1.msra.mxu0 0.0
    %896 = vmatprep.subr.mxu0 0.0
    %897 = vmatpush1.msra.mxu0 0.0
    %898 = vmatprep.subr.mxu0 0.0
    %899 = vmatpush1.msra.mxu0 0.0
    %900 = vmatprep.subr.mxu0 0.0
    %901 = vmatpush1.msra.mxu0 0.0
    %902 = vmatprep.subr.mxu0 0.0
    %903 = vmatpush1.msra.mxu0 0.0
    %904 = vmatprep.subr.mxu0 0.0
    %905 = vmatpush1.msra.mxu0 0.0
    %906 = vmatprep.subr.mxu0 0.0
    %907 = vmatpush1.msra.mxu0 0.0
    %908 = vmatprep.subr.mxu0 0.0
    %909 = vmatpush1.msra.mxu0 0.0
    %910 = vmatprep.subr.mxu0 0.0
    %911 = vmatpush1.msra.mxu0 0.0
    %912 = vmatprep.subr.mxu0 0.0
    %913 = vmatpush1.msra.mxu0 0.0
    %914 = vmatprep.subr.mxu0 0.0
    %915 = vmatpush1.msra.mxu0 0.0
    %916 = vmatprep.subr.mxu0 0.0
    %917 = vmatpush1.msra.mxu0 0.0
    %918 = vmatprep.subr.mxu0 0.0
    %919 = vmatpush1.msra.mxu0 0.0
    %920 = vmatprep.subr.mxu0 0.0
    %921 = vmatpush1.msra.mxu0 0.0
    %922 = vmatprep.subr.mxu0 0.0
    %923 = vmatpush1.msra.mxu0 0.0
    %924 = vmatprep.subr.mxu0 0.0
    %925 = vmatpush1.msra.mxu0 0.0
    %926 = vmatprep.subr.mxu0 0.0
    %927 = vmatpush1.msra.mxu0 0.0
    %928 = vmatprep.subr.mxu0 0.0
    %929 = vmatpush1.msra.mxu0 0.0
    %930 = vmatprep.subr.mxu0 0.0
    %931 = vmatpush1.msra.mxu0 0.0
    %932 = vmatprep.subr.mxu0 0.0
    %933 = vmatpush1.msra.mxu0 0.0
    %934 = vmatprep.subr.mxu0 0.0
    %935 = vmatpush1.msra.mxu0 0.0
    %936 = vmatprep.subr.mxu0 0.0
    %937 = vmatpush1.msra.mxu0 0.0
    %938 = vmatprep.subr.mxu0 0.0
    %939 = vmatpush1.msra.mxu0 0.0
    %940 = vmatprep.subr.mxu0 0.0
    %941 = vmatpush1.msra.mxu0 0.0
    %942 = vmatprep.subr.mxu0 0.0
    %943 = vmatpush1.msra.mxu0 0.0
    %944 = vmatprep.mubr.f32.mxu0 0.0
    %945 = vmatmul.mubr.f32.gmra.mrb[0].mxu0 %v878
    %v946 = vpop.f32.mrb[0].mxu0
    %v947 = vadd.f32 0.0, %v946
    %v948 = vpop.f32.mrb[0].mxu0
    %949 = vdwg.mxu0
    %v951 = vrot.slane %v947, 1
    %v953 = vadd.f32 %v127, %v951
    %v954 = vxor.u32 %v953, 2147483648
    %v955 = vmul.f32 %v954, 1.442695
    %v956 = vpow.pop %v955
    %v957 = vadd.f32 %v956, 1.0
    %v958 = vrcp.pop %v957
    %v959 = vmul.f32 1.0, %v958
    %v960 = vtanh.pop %v953
    %v962 = vrot.slane %v867, 7
    %v964 = vmul.f32 %v959, %v962
    %966 = vrot.lane.b32.xlu0 %v960, 32
    %v967 = vpop.permute.xlu0 %966
    %v969 = vmul.f32 %v959, %v967
    %971 = vrot.lane.b32.xlu0 %v969, 32
    %v972 = vpop.permute.xlu0 %971
    %v974 = vadd.f32 %v964, %v972
    %v975 = vtanh.pop %v974
    %977 = vrot.lane.b32.xlu0 %v975, 32
    %v978 = vpop.permute.xlu0 %977
    %v980 = vmul.f32 %v959, %v978
    %vm981 = vcmask 1040384
    %v982 = vsel %vm981, %v232, %v338
    %vm983 = vcmask 1041408
    %v984 = vsel %vm983, %v982, %v445
    %vm985 = vcmask 1042432
    %v986 = vsel %vm985, %v984, %v552
    %vm987 = vcmask 1043456
    %v988 = vsel %vm987, %v986, %v659
    %vm989 = vcmask 1044480
    %v990 = vsel %vm989, %v988, %v766
    %vm991 = vcmask 1045504
    %v992 = vsel %vm991, %v990, %v873
    %vm993 = vcmask 1046528
    %v994 = vsel %vm993, %v992, %v980
    %v996 = vrot.slane %v980, 7
    %v998 = vrot.slane %v873, 5
    %v1000 = vrot.slane %v766, 3
    %v1002 = vrot.slane %v659, 1
    %v1004 = vrot.slane %v552, 7
    %v1006 = vrot.slane %v445, 5
    %v1008 = vrot.slane %v338, 3
    %v1010 = vrot.slane %v232, 1
    %v1012 = vsel %vm981, %v996, %v998
    %v1013 = vsel %vm983, %v1012, %v1000
    %v1014 = vsel %vm985, %v1013, %v1002
    %v1015 = vsel %vm987, %v1014, %v1004
    %v1016 = vsel %vm989, %v1015, %v1006
    %v1017 = vsel %vm991, %v1016, %v1008
    %v1018 = vsel %vm993, %v1017, %v1010
    %v1019 = vld [vmem:[%s4] sm:$0xff]
    %v1020 = vld [vmem:[%s4 + $0x8] sm:$0xff]
    %v1021 = vld [vmem:[%s4 + $0x10] sm:$0xff]
    %v1022 = vld [vmem:[%s4 + $0x18] sm:$0xff]
    %v1023 = vld [vmem:[%s5] sm:$0xff]
    %v1024 = vld [vmem:[%s5 + $0x8] sm:$0xff]
    %v1025 = vld [vmem:[%s5 + $0x10] sm:$0xff]
    %v1026 = vld [vmem:[%s5 + $0x18] sm:$0xff]
    %1028 = vrot.lane.b32.xlu0 %v1018, 64
    %v1029 = vpop.permute.xlu0 %1028
    %v1030 = vsel %vm134, %v1029, 0
    %1032 = vmatprep.subr.mxu0 0.0
    %1033 = vmatpush1.msra.mxu0 %v1023
    %1034 = vmatprep.subr.mxu0 0.0
    %1035 = vmatpush1.msra.mxu0 %v1024
    %1036 = vmatprep.subr.mxu0 0.0
    %1037 = vmatpush1.msra.mxu0 %v1025
    %1038 = vmatprep.subr.mxu0 0.0
    %1039 = vmatpush1.msra.mxu0 %v1026
    %1040 = vmatprep.subr.mxu0 0.0
    %1041 = vmatpush1.msra.mxu0 0.0
    %1042 = vmatprep.subr.mxu0 0.0
    %1043 = vmatpush1.msra.mxu0 0.0
    %1044 = vmatprep.subr.mxu0 0.0
    %1045 = vmatpush1.msra.mxu0 0.0
    %1046 = vmatprep.subr.mxu0 0.0
    %1047 = vmatpush1.msra.mxu0 0.0
    %1048 = vmatprep.subr.mxu0 0.0
    %1049 = vmatpush1.msra.mxu0 0.0
    %1050 = vmatprep.subr.mxu0 0.0
    %1051 = vmatpush1.msra.mxu0 0.0
    %1052 = vmatprep.subr.mxu0 0.0
    %1053 = vmatpush1.msra.mxu0 0.0
    %1054 = vmatprep.subr.mxu0 0.0
    %1055 = vmatpush1.msra.mxu0 0.0
    %1056 = vmatprep.subr.mxu0 0.0
    %1057 = vmatpush1.msra.mxu0 0.0
    %1058 = vmatprep.subr.mxu0 0.0
    %1059 = vmatpush1.msra.mxu0 0.0
    %1060 = vmatprep.subr.mxu0 0.0
    %1061 = vmatpush1.msra.mxu0 0.0
    %1062 = vmatprep.subr.mxu0 0.0
    %1063 = vmatpush1.msra.mxu0 0.0
    %1064 = vmatprep.subr.mxu0 0.0
    %1065 = vmatpush1.msra.mxu0 0.0
    %1066 = vmatprep.subr.mxu0 0.0
    %1067 = vmatpush1.msra.mxu0 0.0
    %1068 = vmatprep.subr.mxu0 0.0
    %1069 = vmatpush1.msra.mxu0 0.0
    %1070 = vmatprep.subr.mxu0 0.0
    %1071 = vmatpush1.msra.mxu0 0.0
    %1072 = vmatprep.subr.mxu0 0.0
    %1073 = vmatpush1.msra.mxu0 0.0
    %1074 = vmatprep.subr.mxu0 0.0
    %1075 = vmatpush1.msra.mxu0 0.0
    %1076 = vmatprep.subr.mxu0 0.0
    %1077 = vmatpush1.msra.mxu0 0.0
    %1078 = vmatprep.subr.mxu0 0.0
    %1079 = vmatpush1.msra.mxu0 0.0
    %1080 = vmatprep.subr.mxu0 0.0
    %1081 = vmatpush1.msra.mxu0 0.0
    %1082 = vmatprep.subr.mxu0 0.0
    %1083 = vmatpush1.msra.mxu0 0.0
    %1084 = vmatprep.subr.mxu0 0.0
    %1085 = vmatpush1.msra.mxu0 0.0
    %1086 = vmatprep.subr.mxu0 0.0
    %1087 = vmatpush1.msra.mxu0 0.0
    %1088 = vmatprep.subr.mxu0 0.0
    %1089 = vmatpush1.msra.mxu0 0.0
    %1090 = vmatprep.subr.mxu0 0.0
    %1091 = vmatpush1.msra.mxu0 0.0
    %1092 = vmatprep.subr.mxu0 0.0
    %1093 = vmatpush1.msra.mxu0 0.0
    %1094 = vmatprep.subr.mxu0 0.0
    %1095 = vmatpush1.msra.mxu0 0.0
    %1096 = vmatprep.mubr.f32.mxu0 0.0
    %1097 = vmatmul.mubr.f32.gmra.mrb[0].mxu0 %v1030
    %v1098 = vpop.f32.mrb[0].mxu0
    %v1099 = vadd.f32 0.0, %v1098
    %v1100 = vpop.f32.mrb[0].mxu0
    %1101 = vdwg.mxu0
    %1103 = vrot.lane.b32.xlu0 %v994, 64
    %v1104 = vpop.permute.xlu0 %1103
    %v1105 = vsel %vm134, %v1104, 0
    %1107 = vmatprep.subr.mxu0 0.0
    %1108 = vmatpush1.msra.mxu0 %v1019
    %1109 = vmatprep.subr.mxu0 0.0
    %1110 = vmatpush1.msra.mxu0 %v1020
    %1111 = vmatprep.subr.mxu0 0.0
    %1112 = vmatpush1.msra.mxu0 %v1021
    %1113 = vmatprep.subr.mxu0 0.0
    %1114 = vmatpush1.msra.mxu0 %v1022
    %1115 = vmatprep.subr.mxu0 0.0
    %1116 = vmatpush1.msra.mxu0 0.0
    %1117 = vmatprep.subr.mxu0 0.0
    %1118 = vmatpush1.msra.mxu0 0.0
    %1119 = vmatprep.subr.mxu0 0.0
    %1120 = vmatpush1.msra.mxu0 0.0
    %1121 = vmatprep.subr.mxu0 0.0
    %1122 = vmatpush1.msra.mxu0 0.0
    %1123 = vmatprep.subr.mxu0 0.0
    %1124 = vmatpush1.msra.mxu0 0.0
    %1125 = vmatprep.subr.mxu0 0.0
    %1126 = vmatpush1.msra.mxu0 0.0
    %1127 = vmatprep.subr.mxu0 0.0
    %1128 = vmatpush1.msra.mxu0 0.0
    %1129 = vmatprep.subr.mxu0 0.0
    %1130 = vmatpush1.msra.mxu0 0.0
    %1131 = vmatprep.subr.mxu0 0.0
    %1132 = vmatpush1.msra.mxu0 0.0
    %1133 = vmatprep.subr.mxu0 0.0
    %1134 = vmatpush1.msra.mxu0 0.0
    %1135 = vmatprep.subr.mxu0 0.0
    %1136 = vmatpush1.msra.mxu0 0.0
    %1137 = vmatprep.subr.mxu0 0.0
    %1138 = vmatpush1.msra.mxu0 0.0
    %1139 = vmatprep.subr.mxu0 0.0
    %1140 = vmatpush1.msra.mxu0 0.0
    %1141 = vmatprep.subr.mxu0 0.0
    %1142 = vmatpush1.msra.mxu0 0.0
    %1143 = vmatprep.subr.mxu0 0.0
    %1144 = vmatpush1.msra.mxu0 0.0
    %1145 = vmatprep.subr.mxu0 0.0
    %1146 = vmatpush1.msra.mxu0 0.0
    %1147 = vmatprep.subr.mxu0 0.0
    %1148 = vmatpush1.msra.mxu0 0.0
    %1149 = vmatprep.subr.mxu0 0.0
    %1150 = vmatpush1.msra.mxu0 0.0
    %1151 = vmatprep.subr.mxu0 0.0
    %1152 = vmatpush1.msra.mxu0 0.0
    %1153 = vmatprep.subr.mxu0 0.0
    %1154 = vmatpush1.msra.mxu0 0.0
    %1155 = vmatprep.subr.mxu0 0.0
    %1156 = vmatpush1.msra.mxu0 0.0
    %1157 = vmatprep.subr.mxu0 0.0
    %1158 = vmatpush1.msra.mxu0 0.0
    %1159 = vmatprep.subr.mxu0 0.0
    %1160 = vmatpush1.msra.mxu0 0.0
    %1161 = vmatprep.subr.mxu0 0.0
    %1162 = vmatpush1.msra.mxu0 0.0
    %1163 = vmatprep.subr.mxu0 0.0
    %1164 = vmatpush1.msra.mxu0 0.0
    %1165 = vmatprep.subr.mxu0 0.0
    %1166 = vmatpush1.msra.mxu0 0.0
    %1167 = vmatprep.subr.mxu0 0.0
    %1168 = vmatpush1.msra.mxu0 0.0
    %1169 = vmatprep.subr.mxu0 0.0
    %1170 = vmatpush1.msra.mxu0 0.0
    %1171 = vmatprep.mubr.f32.mxu0 0.0
    %1172 = vmatmul.mubr.f32.gmra.mrb[0].mxu0 %v1105
    %v1173 = vpop.f32.mrb[0].mxu0
    %v1174 = vadd.f32 %v1099, %v1173
    %v1175 = vpop.f32.mrb[0].mxu0
    %1176 = vdwg.mxu0
    %v1177 = vld [vmem:[%s6] sm:$0x1]
    %v1179 = vlaneseq
    %v1180 = vshrl.u32 %v1179, 7
    %v1181 = vsub.s32 0, %v1180
    %v1182 = vrot.slane %v1177, %v1181
    %v1184 = vadd.f32 %v1174, %v1182
    %vm1185 = vcmask 31744
    %v1186 = vsel %vm1185, %v1184, -inf
    %1187 = vmax.xlane.f32.xlu0 %v1186
    %v1188 = vpop.xlane.xlu0 %1187
    %v1189 = vsub.f32 %v1184, %v1188
    %v1190 = vmul.f32 %v1189, 1.442695
    %v1191 = vpow.pop %v1190
    %v1192 = vsel %vm1185, %v1191, 0.0
    %1193 = vadd.xlane.f32.xlu0 %v1192
    %v1194 = vpop.xlane.xlu0 %1193
    %v1195 = vlog2.pop %v1194
    %v1196 = vmul.f32 %v1195, 0.6931472
    %v1197 = vsub.f32 %v1189, %v1196
    %1198 = vst.msk [vmem:[%s7] sm:$0xff] %vm1185, %v1197
    // Predicated region
    $region34: #{tpu_custom_call.1} parent=1 // pred_check
      _
    $region35: #{tpu_custom_call.1} parent=1 // pred_check_branch
      %1200 = sbr.rel (0) target = $region37
    $region36: #{tpu_custom_call.1} parent=1 // pred_region
      _
    $region37: #{tpu_custom_call.1} parent=1 // pred_fallthru
      _
    // Predicated region
    $region38: #{tpu_custom_call.1} parent=1 // pred_check
      _
    $region39: #{tpu_custom_call.1} parent=1 // pred_check_branch
      %1202 = sbr.rel (0) target = $region41
    $region40: #{tpu_custom_call.1} parent=1 // pred_region
      _
    $region41: #{tpu_custom_call.1} parent=1 // pred_fallthru
      _
    %1203 = vsyncpa [#allocation3], 1

</llo_original>
